<compile_context>
chip_gen: v7x
topology: tpu7x:2x2x1
jax: 0.10.0
libtpu: 0.0.40
codegen_flags: <defaults>
</compile_context>

<pallas_src>
import jax
import jax.numpy as jnp
from jax.experimental import pallas as pl
from jax.experimental.pallas import tpu as pltpu


_MAX_TILE_B = 1024  # lanes per batch tile; sweep 512-4096 if B grows very large


def _round_up(n, m):
    return ((n + m - 1) // m) * m


def _fused_affine_kernel(w1_ref, b1_ref, w2_ref, b2_ref, x_ref, o_ref):
    """One (2, TILE_B) lane-dense tile of y.T = Wf @ x.T + bf.

    w1_ref / w2_ref: SMEM f32[4]  (row-major PyTorch (out, in) weights)
    b1_ref / b2_ref: SMEM f32[2]
    x_ref  / o_ref : VMEM (2, TILE_B) — features on sublanes, batch on lanes.
    """
    # In-kernel fold of the two affine layers (scalar slots, 12 FLOPs):
    #   Wf = W2 @ W1,   bf = W2 @ b1 + b2
    w1_00 = w1_ref[0]; w1_01 = w1_ref[1]; w1_10 = w1_ref[2]; w1_11 = w1_ref[3]
    w2_00 = w2_ref[0]; w2_01 = w2_ref[1]; w2_10 = w2_ref[2]; w2_11 = w2_ref[3]
    b1_0 = b1_ref[0]; b1_1 = b1_ref[1]
    b2_0 = b2_ref[0]; b2_1 = b2_ref[1]

    wf_00 = w2_00 * w1_00 + w2_01 * w1_10
    wf_01 = w2_00 * w1_01 + w2_01 * w1_11
    wf_10 = w2_10 * w1_00 + w2_11 * w1_10
    wf_11 = w2_10 * w1_01 + w2_11 * w1_11
    bf_0 = w2_00 * b1_0 + w2_01 * b1_1 + b2_0
    bf_1 = w2_10 * b1_0 + w2_11 * b1_1 + b2_1

    # Pure VPU broadcast FMAs — deliberately NOT jnp.dot / the MXU.
    x0 = x_ref[0:1, :].astype(jnp.float32)  # (1, TILE_B)
    x1 = x_ref[1:2, :].astype(jnp.float32)
    o_ref[0:1, :] = (wf_00 * x0 + wf_01 * x1 + bf_0).astype(o_ref.dtype)
    o_ref[1:2, :] = (wf_10 * x0 + wf_11 * x1 + bf_1).astype(o_ref.dtype)


def linear_model_forward(x, w1, b1, w2, b2):
    """x: (B, 2). PyTorch convention: w* is (out, in), b* is (out,).

    Returns (B, 2), dtype follows x.dtype, equal to fc2(fc1(x)).
    """
    B, k_in = x.shape
    assert k_in == 2 and w1.shape == (2, 2) and w2.shape == (2, 2)
    dtype = x.dtype

    # Lane-dense layout (wrapper-side layout plumbing only): batch on lanes.
    tile_b = min(_MAX_TILE_B, _round_up(B, 128))
    b_pad = _round_up(B, tile_b)
    xt = x.T                                       # (2, B)
    if b_pad != B:
        xt = jnp.pad(xt, ((0, 0), (0, b_pad - B)))

    # Raw parameters as flat 1-D f32 in SMEM (2-D SMEM would pad to [8,128] words).
    w1f = w1.astype(jnp.float32).reshape(-1)       # f32[4]
    b1f = b1.astype(jnp.float32).reshape(-1)       # f32[2]
    w2f = w2.astype(jnp.float32).reshape(-1)       # f32[4]
    b2f = b2.astype(jnp.float32).reshape(-1)       # f32[2]

    smem = pl.BlockSpec(memory_space=pltpu.MemorySpace.SMEM)
    grid = (b_pad // tile_b,)
    dsize = jnp.dtype(dtype).itemsize

    out_t = pl.pallas_call(
        _fused_affine_kernel,
        out_shape=jax.ShapeDtypeStruct((2, b_pad), dtype),
        grid=grid,
        in_specs=[
            smem, smem, smem, smem,                          # w1, b1, w2, b2
            pl.BlockSpec((2, tile_b), lambda i: (0, i)),     # x.T tile (VMEM)
        ],
        out_specs=pl.BlockSpec((2, tile_b), lambda i: (0, i)),
        compiler_params=pltpu.CompilerParams(
            dimension_semantics=("parallel",),   # batch tiles across v7x's 2 TCs
            vmem_limit_bytes=8 * 1024 * 1024,    # generous headroom, safe on 64 MiB v7x
        ),
        cost_estimate=pl.CostEstimate(
            flops=8 * b_pad,                     # 2 mul + 2 add per output element
            transcendentals=0,
            bytes_accessed=dsize * 4 * b_pad + 4 * 12,
        ),
    )(w1f, b1f, w2f, b2f, xt)

    return out_t[:, :B].T                        # back to (B, 2)


def _ref_forward(x, w1, b1, w2, b2):
    h = x @ w1.T + b1
    return h @ w2.T + b2


if __name__ == "__main__":
    key = jax.random.PRNGKey(0)
    kx, kw1, kb1, kw2, kb2 = jax.random.split(key, 5)

    B = 8  # small batch, 2 input features (matches nn.Linear(2, 2) stack)
    x = jax.random.normal(kx, (B, 2), dtype=jnp.float32)

    # Deterministic parameter init (PyTorch nn.Linear shapes: W (out,in), b (out,))
    w1 = jax.random.uniform(kw1, (2, 2), jnp.float32, -0.5, 0.5)
    b1 = jax.random.uniform(kb1, (2,), jnp.float32, -0.5, 0.5)
    w2 = jax.random.uniform(kw2, (2, 2), jnp.float32, -0.5, 0.5)
    b2 = jax.random.uniform(kb2, (2,), jnp.float32, -0.5, 0.5)

    fwd = jax.jit(linear_model_forward)
    out = jax.block_until_ready(fwd(x, w1, b1, w2, b2))

    ref = _ref_forward(x, w1, b1, w2, b2)
    assert out.shape == (B, 2)
    assert out.dtype == x.dtype
    assert jnp.allclose(out, ref, atol=1e-5, rtol=1e-5), "mismatch vs reference"

    print("KERNEL_OK")
</pallas_src>

<mosaic_0001>
module attributes {stable_mosaic.version = 11 : i64} {
  func.func @_fused_affine_kernel(%arg0: i32, %arg1: memref<4xf32, #tpu.memory_space<smem>>, %arg2: memref<2xf32, #tpu.memory_space<smem>>, %arg3: memref<4xf32, #tpu.memory_space<smem>>, %arg4: memref<2xf32, #tpu.memory_space<smem>>, %arg5: memref<2x128xf32, #tpu.memory_space<vmem>>, %arg6: memref<2x128xf32, #tpu.memory_space<vmem>>) attributes {dimension_semantics = [#tpu.dimension_semantics<parallel>], iteration_bounds = array<i64: 1>, scalar_prefetch = 0 : i64, scratch_operands = 0 : i64, tpu.core_type = #tpu.core_type<tc>, window_params = [{transform_indices = @transform_0, window_bounds = array<i64: 4>}, {transform_indices = @transform_1, window_bounds = array<i64: 2>}, {transform_indices = @transform_2, window_bounds = array<i64: 4>}, {transform_indices = @transform_3, window_bounds = array<i64: 2>}, {transform_indices = @transform_4, window_bounds = array<i64: 2, 128>}, {transform_indices = @transform_5, window_bounds = array<i64: 2, 128>}]} {
    %c0 = arith.constant 0 : index
    %0 = memref.load %arg1[%c0] : memref<4xf32, #tpu.memory_space<smem>>
    %c1 = arith.constant 1 : index
    %1 = memref.load %arg1[%c1] : memref<4xf32, #tpu.memory_space<smem>>
    %c2 = arith.constant 2 : index
    %2 = memref.load %arg1[%c2] : memref<4xf32, #tpu.memory_space<smem>>
    %c3 = arith.constant 3 : index
    %3 = memref.load %arg1[%c3] : memref<4xf32, #tpu.memory_space<smem>>
    %c0_0 = arith.constant 0 : index
    %4 = memref.load %arg3[%c0_0] : memref<4xf32, #tpu.memory_space<smem>>
    %c1_1 = arith.constant 1 : index
    %5 = memref.load %arg3[%c1_1] : memref<4xf32, #tpu.memory_space<smem>>
    %c2_2 = arith.constant 2 : index
    %6 = memref.load %arg3[%c2_2] : memref<4xf32, #tpu.memory_space<smem>>
    %c3_3 = arith.constant 3 : index
    %7 = memref.load %arg3[%c3_3] : memref<4xf32, #tpu.memory_space<smem>>
    %c0_4 = arith.constant 0 : index
    %8 = memref.load %arg2[%c0_4] : memref<2xf32, #tpu.memory_space<smem>>
    %c1_5 = arith.constant 1 : index
    %9 = memref.load %arg2[%c1_5] : memref<2xf32, #tpu.memory_space<smem>>
    %c0_6 = arith.constant 0 : index
    %10 = memref.load %arg4[%c0_6] : memref<2xf32, #tpu.memory_space<smem>>
    %c1_7 = arith.constant 1 : index
    %11 = memref.load %arg4[%c1_7] : memref<2xf32, #tpu.memory_space<smem>>
    %12 = arith.mulf %4, %0 : f32
    %13 = arith.mulf %5, %2 : f32
    %14 = arith.addf %12, %13 : f32
    %15 = arith.mulf %4, %1 : f32
    %16 = arith.mulf %5, %3 : f32
    %17 = arith.addf %15, %16 : f32
    %18 = arith.mulf %6, %0 : f32
    %19 = arith.mulf %7, %2 : f32
    %20 = arith.addf %18, %19 : f32
    %21 = arith.mulf %6, %1 : f32
    %22 = arith.mulf %7, %3 : f32
    %23 = arith.addf %21, %22 : f32
    %24 = arith.mulf %4, %8 : f32
    %25 = arith.mulf %5, %9 : f32
    %26 = arith.addf %24, %25 : f32
    %27 = arith.addf %26, %10 : f32
    %28 = arith.mulf %6, %8 : f32
    %29 = arith.mulf %7, %9 : f32
    %30 = arith.addf %28, %29 : f32
    %31 = arith.addf %30, %11 : f32
    %c0_8 = arith.constant 0 : index
    %c0_9 = arith.constant 0 : index
    %32 = vector.load %arg5[%c0_8, %c0_9] : memref<2x128xf32, #tpu.memory_space<vmem>>, vector<1x128xf32>
    %c1_10 = arith.constant 1 : index
    %c0_11 = arith.constant 0 : index
    %33 = vector.load %arg5[%c1_10, %c0_11] : memref<2x128xf32, #tpu.memory_space<vmem>>, vector<1x128xf32>
    %34 = vector.broadcast %14 : f32 to vector<1x128xf32>
    %35 = arith.mulf %34, %32 : vector<1x128xf32>
    %36 = vector.broadcast %17 : f32 to vector<1x128xf32>
    %37 = arith.mulf %36, %33 : vector<1x128xf32>
    %38 = arith.addf %35, %37 : vector<1x128xf32>
    %39 = vector.broadcast %27 : f32 to vector<1x128xf32>
    %40 = arith.addf %38, %39 : vector<1x128xf32>
    %c0_12 = arith.constant 0 : index
    %c0_13 = arith.constant 0 : index
    %41 = vector.load %arg6[%c0_12, %c0_13] : memref<2x128xf32, #tpu.memory_space<vmem>>, vector<1x128xf32>
    tpu.vector_store %arg6[%c0_12, %c0_13], %40 {strides = array<i32>} : memref<2x128xf32, #tpu.memory_space<vmem>>, vector<1x128xf32>,
    %42 = vector.broadcast %20 : f32 to vector<1x128xf32>
    %43 = arith.mulf %42, %32 : vector<1x128xf32>
    %44 = vector.broadcast %23 : f32 to vector<1x128xf32>
    %45 = arith.mulf %44, %33 : vector<1x128xf32>
    %46 = arith.addf %43, %45 : vector<1x128xf32>
    %47 = vector.broadcast %31 : f32 to vector<1x128xf32>
    %48 = arith.addf %46, %47 : vector<1x128xf32>
    %c1_14 = arith.constant 1 : index
    %c0_15 = arith.constant 0 : index
    %49 = vector.load %arg6[%c1_14, %c0_15] : memref<2x128xf32, #tpu.memory_space<vmem>>, vector<1x128xf32>
    tpu.vector_store %arg6[%c1_14, %c0_15], %48 {strides = array<i32>} : memref<2x128xf32, #tpu.memory_space<vmem>>, vector<1x128xf32>,
    return
  }
  func.func @transform_0(%arg0: i32) -> i32 {
    %c0_i32 = arith.constant 0 : i32
    %c0_i32_0 = arith.constant 0 : i32
    return %c0_i32 : i32
  }
  func.func @transform_1(%arg0: i32) -> i32 {
    %c0_i32 = arith.constant 0 : i32
    %c0_i32_0 = arith.constant 0 : i32
    return %c0_i32 : i32
  }
  func.func @transform_2(%arg0: i32) -> i32 {
    %c0_i32 = arith.constant 0 : i32
    %c0_i32_0 = arith.constant 0 : i32
    return %c0_i32 : i32
  }
  func.func @transform_3(%arg0: i32) -> i32 {
    %c0_i32 = arith.constant 0 : i32
    %c0_i32_0 = arith.constant 0 : i32
    return %c0_i32 : i32
  }
  func.func @transform_4(%arg0: i32) -> (i32, i32) {
    %c0_i32 = arith.constant 0 : i32
    %c0_i32_0 = arith.constant 0 : i32
    return %c0_i32, %arg0 : i32, i32
  }
  func.func @transform_5(%arg0: i32) -> (i32, i32) {
    %c0_i32 = arith.constant 0 : i32
    %c0_i32_0 = arith.constant 0 : i32
    return %c0_i32, %arg0 : i32, i32
  }
}

</mosaic_0001>

<llo_original>
// kernel: linear_model_forward.1
$region0: #{linear_model_forward.1}
  #allocation0 [shape = 'u32[]', space=smem, size = 0x4, offset = 0x4, fixed_abs, tag = 'smem constant byte address 0x4 - core index']
  #allocation1 [shape = 'u32[144,128]{1,0:T(1,128)}', space=vmem, size = 0x12000, scoped, tag = 'internal scratch']
  %s0 = inlined_call_operand.vmem [shape: f32[4], index: 0, kind: input, shape index: {}]
  %s1 = inlined_call_operand.vmem [shape: f32[2], index: 1, kind: input, shape index: {}]
  %s2 = inlined_call_operand.vmem [shape: f32[4], index: 2, kind: input, shape index: {}]
  %s3 = inlined_call_operand.vmem [shape: f32[2], index: 3, kind: input, shape index: {}]
  %s4 = inlined_call_operand.vmem [shape: f32[2,128], index: 4, kind: input, shape index: {}]
  %s5 = inlined_call_operand.vmem [shape: f32[2,128], index: 5, kind: output, shape index: {}]
  %s6 = sld [smem:[#allocation0]]
  $region46: #{linear_model_forward.1} parent=0
    _
  %s8 = ssub.s32 1, %s6
  %s9 = scalar_select 0, %s8, %s6
  $region1: #{linear_model_forward.1} parent=0
    #allocation2 [shape = 'u8[512]{0}', space=smem, size = 0x200, scoped, tag = 'input window, operand 0, single buffered']
    #allocation3 [shape = 's32[1]{0}', space=sflag, size = 0x4, scoped, tag = 'scoped memory for linear_model_forward.1']
    #allocation4 [shape = 'u8[512]{0}', space=smem, size = 0x200, scoped, tag = 'input window, operand 1, single buffered']
    #allocation5 [shape = 's32[1]{0}', space=sflag, size = 0x4, scoped, tag = 'scoped memory for linear_model_forward.1']
    #allocation6 [shape = 'u8[512]{0}', space=smem, size = 0x200, scoped, tag = 'input window, operand 2, single buffered']
    #allocation7 [shape = 'u8[512]{0}', space=smem, size = 0x200, scoped, tag = 'input window, operand 3, single buffered']
    #allocation8 [shape = 's32[1]{0}', space=sflag, size = 0x4, scoped, tag = 'scoped memory for linear_model_forward.1']
    %10 = vsyncpa [#allocation3], 0
    %11 = vsyncpa [#allocation5], 0
    %12 = vsyncpa [#allocation8], 0
    // Predicated region
    $region2: #{linear_model_forward.1} parent=1 // pred_check
      _
    $region3: #{linear_model_forward.1} parent=1 // pred_check_branch
      %14 = sbr.rel (0) target = $region5
    $region4: #{linear_model_forward.1} parent=1 // pred_region
      %s16 = ssub.s32 16, 16
      %17 = vsyncadd [#allocation3], %s16
      %s19 = sshll.u32 %s0, 4
      %s20 = int_to_ptr.vmem [resolvable:$true] %s19
      %22 = dma.vmem_to_smem %s20, 16, [#allocation2], [#allocation3]
    $region5: #{linear_model_forward.1} parent=1 // pred_fallthru
      _
    // Predicated region
    $region6: #{linear_model_forward.1} parent=1 // pred_check
      _
    $region7: #{linear_model_forward.1} parent=1 // pred_check_branch
      %24 = sbr.rel (0) target = $region9
    $region8: #{linear_model_forward.1} parent=1 // pred_region
      %s26 = ssub.s32 16, 16
      %27 = vsyncadd [#allocation5], %s26
      %s29 = sshll.u32 %s1, 4
      %s30 = int_to_ptr.vmem [resolvable:$true] %s29
      %32 = dma.vmem_to_smem %s30, 16, [#allocation4], [#allocation5]
    $region9: #{linear_model_forward.1} parent=1 // pred_fallthru
      _
    // Predicated region
    $region10: #{linear_model_forward.1} parent=1 // pred_check
      _
    $region11: #{linear_model_forward.1} parent=1 // pred_check_branch
      %34 = sbr.rel (0) target = $region13
    $region12: #{linear_model_forward.1} parent=1 // pred_region
      %s36 = ssub.s32 16, 16
      %37 = vsyncadd [#allocation5], %s36
      %s39 = sshll.u32 %s2, 4
      %s40 = int_to_ptr.vmem [resolvable:$true] %s39
      %42 = dma.vmem_to_smem %s40, 16, [#allocation6], [#allocation5]
    $region13: #{linear_model_forward.1} parent=1 // pred_fallthru
      _
    // Predicated region
    $region14: #{linear_model_forward.1} parent=1 // pred_check
      _
    $region15: #{linear_model_forward.1} parent=1 // pred_check_branch
      %44 = sbr.rel (0) target = $region17
    $region16: #{linear_model_forward.1} parent=1 // pred_region
      %s46 = ssub.s32 16, 16
      %47 = vsyncadd [#allocation8], %s46
      %s49 = sshll.u32 %s3, 4
      %s50 = int_to_ptr.vmem [resolvable:$true] %s49
      %52 = dma.vmem_to_smem %s50, 16, [#allocation7], [#allocation8]
    $region17: #{linear_model_forward.1} parent=1 // pred_fallthru
      _
    // Predicated region
    $region18: #{linear_model_forward.1} parent=1 // pred_check
      _
    $region19: #{linear_model_forward.1} parent=1 // pred_check_branch
      %54 = sbr.rel (0) target = $region21
    $region20: #{linear_model_forward.1} parent=1 // pred_region
      _
    $region21: #{linear_model_forward.1} parent=1 // pred_fallthru
      _
    // Predicated region
    $region22: #{linear_model_forward.1} parent=1 // pred_check
      _
    $region23: #{linear_model_forward.1} parent=1 // pred_check_branch
      %56 = sbr.rel (0) target = $region25
    $region24: #{linear_model_forward.1} parent=1 // pred_region
      %57 = dma.done [#allocation3], 16
    $region25: #{linear_model_forward.1} parent=1 // pred_fallthru
      _
    // Predicated region
    $region26: #{linear_model_forward.1} parent=1 // pred_check
      _
    $region27: #{linear_model_forward.1} parent=1 // pred_check_branch
      %59 = sbr.rel (0) target = $region29
    $region28: #{linear_model_forward.1} parent=1 // pred_region
      %60 = dma.done [#allocation5], 16
    $region29: #{linear_model_forward.1} parent=1 // pred_fallthru
      _
    // Predicated region
    $region30: #{linear_model_forward.1} parent=1 // pred_check
      _
    $region31: #{linear_model_forward.1} parent=1 // pred_check_branch
      %62 = sbr.rel (0) target = $region33
    $region32: #{linear_model_forward.1} parent=1 // pred_region
      %63 = dma.done [#allocation5], 16
    $region33: #{linear_model_forward.1} parent=1 // pred_fallthru
      _
    // Predicated region
    $region34: #{linear_model_forward.1} parent=1 // pred_check
      _
    $region35: #{linear_model_forward.1} parent=1 // pred_check_branch
      %65 = sbr.rel (0) target = $region37
    $region36: #{linear_model_forward.1} parent=1 // pred_region
      %66 = dma.done [#allocation8], 16
    $region37: #{linear_model_forward.1} parent=1 // pred_fallthru
      _
    %67 = sfence
    %s68 = sld [smem:[#allocation2]]
    %s69 = sld [smem:[#allocation2 + $0x1]]
    %s70 = sld [smem:[#allocation2 + $0x2]]
    %s71 = sld [smem:[#allocation2 + $0x3]]
    %s72 = sld [smem:[#allocation6]]
    %s73 = sld [smem:[#allocation6 + $0x1]]
    %s74 = sld [smem:[#allocation6 + $0x2]]
    %s75 = sld [smem:[#allocation6 + $0x3]]
    %s76 = sld [smem:[#allocation4]]
    %s77 = sld [smem:[#allocation4 + $0x1]]
    %s78 = sld [smem:[#allocation7]]
    %s79 = sld [smem:[#allocation7 + $0x1]]
    %s80 = smul.f32 %s72, %s68
    %s81 = smul.f32 %s73, %s70
    %s82 = sadd.f32 %s80, %s81
    %s83 = smul.f32 %s72, %s69
    %s84 = smul.f32 %s73, %s71
    %s85 = sadd.f32 %s83, %s84
    %s86 = smul.f32 %s74, %s68
    %s87 = smul.f32 %s75, %s70
    %s88 = sadd.f32 %s86, %s87
    %s89 = smul.f32 %s74, %s69
    %s90 = smul.f32 %s75, %s71
    %s91 = sadd.f32 %s89, %s90
    %s92 = smul.f32 %s72, %s76
    %s93 = smul.f32 %s73, %s77
    %s94 = sadd.f32 %s92, %s93
    %s95 = sadd.f32 %s94, %s78
    %s96 = smul.f32 %s74, %s76
    %s97 = smul.f32 %s75, %s77
    %s98 = sadd.f32 %s96, %s97
    %s99 = sadd.f32 %s98, %s79
    %v100 = vld [vmem:[%s4] sm:$0x1]
    %v101 = vld [vmem:[%s4 + $0x1] sm:$0x1]
    %v102 = vstv %s82
    %v103 = vmul.f32 %v102, %v100
    %v104 = vstv %s85
    %v105 = vmul.f32 %v104, %v101
    %v106 = vadd.f32 %v103, %v105
    %v107 = vstv %s95
    %v108 = vadd.f32 %v106, %v107
    %109 = vst [vmem:[%s5] sm:$0x1] %v108
    %v110 = vstv %s88
    %v111 = vmul.f32 %v110, %v100
    %v112 = vstv %s91
    %v113 = vmul.f32 %v112, %v101
    %v114 = vadd.f32 %v111, %v113
    %v115 = vstv %s99
    %v116 = vadd.f32 %v114, %v115
    %117 = vst [vmem:[%s5 + $0x1] sm:$0x1] %v116
    // Predicated region
    $region38: #{linear_model_forward.1} parent=1 // pred_check
      _
    $region39: #{linear_model_forward.1} parent=1 // pred_check_branch
      %119 = sbr.rel (0) target = $region41
    $region40: #{linear_model_forward.1} parent=1 // pred_region
      _
    $region41: #{linear_model_forward.1} parent=1 // pred_fallthru
      _
    // Predicated region
    $region42: #{linear_model_forward.1} parent=1 // pred_check
      _
    $region43: #{linear_model_forward.1} parent=1 // pred_check_branch
      %121 = sbr.rel (0) target = $region45
    $region44: #{linear_model_forward.1} parent=1 // pred_region
      _
    $region45: #{linear_model_forward.1} parent=1 // pred_fallthru
      _
    %122 = vsyncpa [#allocation3], 1
    %123 = vsyncpa [#allocation5], 1
    %124 = vsyncpa [#allocation8], 1

</llo_original>
